<compile_context>
chip_gen: v6e
topology: v6e:2x2x1
jax: 0.10.0
libtpu: 0.0.40
codegen_flags: <defaults>
</compile_context>

<pallas_src>
import functools
import math
from typing import NamedTuple

import jax
import jax.numpy as jnp
from jax.experimental import pallas as pl
from jax.experimental.pallas import tpu as pltpu


# ---------------------------------------------------------------------------
# Helpers
# ---------------------------------------------------------------------------
def _round_up(v, m):
    return (v + m - 1) // m * m


def _vmem_capacity_bytes():
    """Physical VMEM of the local TPU generation (capability probe only)."""
    try:
        cap = int(pltpu.get_tpu_info().vmem_capacity_bytes)
        if cap > 0:
            return cap
    except Exception:  # probe failure only; never masks kernel errors
        pass
    return 64 * 1024 * 1024  # conservative default: v7x has 64 MiB (v5e/v6e: 128 MiB)


def _vmem_budget_bytes():
    # ~75% of physical VMEM: ~96 MiB on v5e/v6e parts, ~48 MiB on v7x.
    return _vmem_capacity_bytes() * 3 // 4


# ---------------------------------------------------------------------------
# Kernel
# ---------------------------------------------------------------------------
def ffn_kernel(x_ref, w1_ref, b1_ref, w2_ref, b2_ref, o_ref, *scratch, ndff):
    """One (row-tile, dff-tile) step of lin2(relu(lin1(x))).

    EqualizedLinear scales are already folded into w2 (c1*c2) and b2 (c2), which
    is exact because c1 > 0 commutes with ReLU (see pack_ffn_weights).
    """
    h = jnp.dot(x_ref[...], w1_ref[...], preferred_element_type=jnp.float32)
    h = jnp.maximum(h + b1_ref[...], 0.0)
    # TODO(synk): nn.Dropout in training mode would need pltpu.prng_random_bits;
    # forward is implemented in eval mode (dropout == identity).
    contrib = jnp.dot(h.astype(w2_ref.dtype), w2_ref[...],
                      preferred_element_type=jnp.float32)

    if ndff == 1:
        # Common case: the whole dff reduction fits in one tile -> write directly.
        o_ref[...] = (contrib + b2_ref[...]).astype(o_ref.dtype)
    else:
        acc_ref, = scratch
        j = pl.program_id(1)

        @pl.when(j == 0)
        def _():
            acc_ref[...] = jnp.zeros_like(acc_ref)

        acc_ref[...] += contrib

        @pl.when(j == ndff - 1)
        def _():
            o_ref[...] = (acc_ref[...] + b2_ref[...]).astype(o_ref.dtype)


# ---------------------------------------------------------------------------
# Weight packing (do once, reuse across forward calls)
# ---------------------------------------------------------------------------
class PackedFFN(NamedTuple):
    w1_t: jax.Array   # (din_p, dff_p)  compute dtype, transposed, zero padded
    b1: jax.Array     # (1,  dff_p)     f32
    w2_t: jax.Array   # (dff_p, dout_p) compute dtype, pre-scaled by c1*c2
    b2: jax.Array     # (1,  dout_p)    f32, pre-scaled by c2
    dout: int
    tdff: int         # dff-reduction tile (multiple of 128, divides dff_p)


def pack_ffn_weights(w1, b1, w2, b2, *, compute_dtype=jnp.bfloat16):
    """Pack torch-layout weights once: transpose + 128-pad + cast + scale folding.

    w1: (dff, din), w2: (dout, dff). EqualizedLinear scales c1 = sqrt(2/din),
    c2 = sqrt(2/dff).  relu((x@W1^T + b1) * c1) == c1 * relu(x@W1^T + b1) since
    c1 > 0, so both scales fold into W2 (c1*c2) and b2 (c2).
    """
    dff, din = w1.shape
    dout = w2.shape[0]
    c1 = math.sqrt(2.0 / din)
    c2 = math.sqrt(2.0 / dff)

    din_p = _round_up(din, 128)
    dout_p = _round_up(dout, 128)

    # dff reduction tile: largest multiple of 128 whose double-buffered weight
    # blocks (w1 (din_p,tdff) + w2 (tdff,dout_p)) stay within half the VMEM budget.
    in_b = jnp.dtype(compute_dtype).itemsize
    weight_budget = _vmem_budget_bytes() // 2
    tdff_cap = max(128, weight_budget // (2 * (din_p + dout_p) * in_b) // 128 * 128)
    tdff = int(min(_round_up(dff, 128), tdff_cap))
    dff_p = _round_up(dff, tdff)   # guarantees tdff | dff_p

    w1_t = jnp.zeros((din_p, dff_p), compute_dtype).at[:din, :dff].set(
        w1.T.astype(compute_dtype))
    b1_p = jnp.zeros((1, dff_p), jnp.float32).at[0, :dff].set(
        b1.astype(jnp.float32))
    w2_t = jnp.zeros((dff_p, dout_p), compute_dtype).at[:dff, :dout].set(
        (w2.T.astype(jnp.float32) * (c1 * c2)).astype(compute_dtype))
    b2_p = jnp.zeros((1, dout_p), jnp.float32).at[0, :dout].set(
        b2.astype(jnp.float32) * c2)
    return PackedFFN(w1_t, b1_p, w2_t, b2_p, int(dout), tdff)


# ---------------------------------------------------------------------------
# Forward (jit-fused: cast/pad + pallas_call + slice/reshape in one program)
# ---------------------------------------------------------------------------
@functools.partial(jax.jit, static_argnames=("dout", "tm", "tdff", "vmem_limit"))
def _ffn_forward_impl(x, w1_t, b1_p, w2_t, b2_p, *, dout, tm, tdff, vmem_limit):
    lead = x.shape[:-1]
    din = x.shape[-1]
    N = math.prod(lead)
    din_p, dff_p = w1_t.shape
    dout_p = w2_t.shape[1]
    ndff = dff_p // tdff

    # Activation prep fuses under jit: one cast (+ K-padding only when din is not
    # already a multiple of 128).  Rows are NOT padded; the grid uses cdiv and the
    # last partial row tile is masked on store.
    x2d = x.reshape(N, din).astype(w1_t.dtype)
    if din != din_p:
        x2d = jnp.pad(x2d, ((0, 0), (0, din_p - din)))

    grid = (pl.cdiv(N, tm), ndff)
    kernel = functools.partial(ffn_kernel, ndff=ndff)
    scratch = [] if ndff == 1 else [pltpu.VMEM((tm, dout_p), jnp.float32)]

    out2d = pl.pallas_call(
        kernel,
        out_shape=jax.ShapeDtypeStruct((N, dout_p), x.dtype),
        grid_spec=pltpu.PrefetchScalarGridSpec(
            num_scalar_prefetch=0,
            grid=grid,
            in_specs=[
                pl.BlockSpec((tm, din_p), lambda i, j: (i, 0)),     # x rows
                pl.BlockSpec((din_p, tdff), lambda i, j: (0, j)),   # w1 slab
                pl.BlockSpec((1, tdff), lambda i, j: (0, j)),       # b1 slab
                pl.BlockSpec((tdff, dout_p), lambda i, j: (j, 0)),  # w2 slab
                pl.BlockSpec((1, dout_p), lambda i, j: (0, 0)),     # b2 (constant)
            ],
            out_specs=pl.BlockSpec((tm, dout_p), lambda i, j: (i, 0)),
            scratch_shapes=scratch,
        ),
        compiler_params=pltpu.CompilerParams(
            dimension_semantics=("parallel", "arbitrary"),
            vmem_limit_bytes=vmem_limit),
    )(x2d, w1_t, b1_p, w2_t, b2_p)

    # Padded output lanes are dropped here; under jit this slice fuses with the
    # reshape / downstream consumer instead of a separate eager copy.
    return out2d[:, :dout].reshape(*lead, dout)


def _choose_row_tile(N, packed, out_dtype, tm_req):
    """Pick the row tile (multiple of 8, >=256 when VMEM allows) and vmem limit."""
    din_p, dff_p = packed.w1_t.shape
    dout_p = packed.w2_t.shape[1]
    tdff = packed.tdff
    in_b = jnp.dtype(packed.w1_t.dtype).itemsize
    out_b = jnp.dtype(out_dtype).itemsize
    budget = _vmem_budget_bytes()

    # Resident (double-buffered) weight/bias blocks per grid step.
    wbytes = (2 * (din_p * tdff + tdff * dout_p) * in_b
              + 2 * 8 * (tdff + dout_p) * 4)

    def footprint(tm_):
        acc = 0 if dff_p == tdff else tm_ * dout_p * 4      # f32 accumulator scratch
        return (wbytes
                + 2 * tm_ * din_p * in_b                     # x tile (double buffer)
                + 2 * tm_ * dout_p * out_b                   # out tile (double buffer)
                + tm_ * tdff * 4                             # f32 intermediate h
                + acc)

    tm = max(8, _round_up(min(tm_req, _round_up(N, 8)), 8))
    while tm > 256 and footprint(tm) > budget:   # prefer keeping the MXU M dim full
        tm = _round_up(tm // 2, 8)
    while tm > 8 and footprint(tm) > budget:
        tm = _round_up(tm // 2, 8)

    vmem_limit = int(min(max(footprint(tm) + 16 * 1024 * 1024, 32 * 1024 * 1024),
                         _vmem_capacity_bytes() * 9 // 10))
    return tm, vmem_limit


def ffn_apply(packed, x, *, tm=1024):
    """Apply a pre-packed FFNetwork head to x of shape (..., din)."""
    N = math.prod(x.shape[:-1])
    tm_, vmem_limit = _choose_row_tile(N, packed, x.dtype, tm)
    return _ffn_forward_impl(x, packed.w1_t, packed.b1, packed.w2_t, packed.b2,
                             dout=packed.dout, tm=tm_, tdff=packed.tdff,
                             vmem_limit=vmem_limit)


def ff_network_forward(x, w1, b1, w2, b2, *, tm=1024, compute_dtype=jnp.bfloat16):
    """One-shot convenience API (packs weights, then applies).  For repeated calls,
    pack once with pack_ffn_weights() and reuse ffn_apply()."""
    packed = pack_ffn_weights(w1, b1, w2, b2, compute_dtype=compute_dtype)
    return ffn_apply(packed, x, tm=tm)


# ---------------------------------------------------------------------------
# References
# ---------------------------------------------------------------------------
def ff_network_reference_f32(x, w1, b1, w2, b2):
    """Pure-f32 reference mirroring the PyTorch forward (eval mode)."""
    din = x.shape[-1]
    dff = w1.shape[0]
    c1 = math.sqrt(2.0 / din)
    c2 = math.sqrt(2.0 / dff)
    h = jnp.maximum((x @ w1.T + b1) * c1, 0.0)
    return (h @ w2.T + b2) * c2


def ff_network_reference_bf16(x, w1, b1, w2, b2):
    """Reference with the kernel's numerics: bf16 operands, f32 accumulation,
    c1*c2 folded into w2 before the bf16 cast, c2 folded into b2."""
    din = x.shape[-1]
    dff = w1.shape[0]
    dout = w2.shape[0]
    c1 = math.sqrt(2.0 / din)
    c2 = math.sqrt(2.0 / dff)
    xb = x.reshape(-1, din).astype(jnp.bfloat16)
    h = jnp.dot(xb, w1.T.astype(jnp.bfloat16), preferred_element_type=jnp.float32)
    h = jnp.maximum(h + b1.astype(jnp.float32), 0.0)
    w2s = (w2.T.astype(jnp.float32) * (c1 * c2)).astype(jnp.bfloat16)
    o = jnp.dot(h.astype(jnp.bfloat16), w2s, preferred_element_type=jnp.float32)
    o = o + b2.astype(jnp.float32) * c2
    return o.reshape(x.shape[:-1] + (dout,))


# ---------------------------------------------------------------------------
# Self-test
# ---------------------------------------------------------------------------
if __name__ == "__main__":
    B, S = 2, 8
    din, dff, dout = 32, 64, 16

    key = jax.random.PRNGKey(0)
    kx, kw1, kw2 = jax.random.split(key, 3)

    x = jax.random.normal(kx, (B, S, din), dtype=jnp.float32)
    # EqualizedLinear init: weight ~ N(0, 1), bias = 0 (deterministic, in-script).
    w1 = jax.random.normal(kw1, (dff, din), dtype=jnp.float32)
    b1 = jnp.zeros((dff,), dtype=jnp.float32)
    w2 = jax.random.normal(kw2, (dout, dff), dtype=jnp.float32)
    b2 = jnp.zeros((dout,), dtype=jnp.float32)

    packed = pack_ffn_weights(w1, b1, w2, b2)   # pack once, reuse across calls
    out = jax.block_until_ready(ffn_apply(packed, x))
    assert out.shape == (B, S, dout), out.shape

    # Tight check against a reference with identical numerics (bf16 ops, f32 acc,
    # same scale folding).
    ref_bf16 = ff_network_reference_bf16(x, w1, b1, w2, b2)
    assert jnp.allclose(out, ref_bf16, atol=1e-3, rtol=1e-3), "mismatch vs bf16 reference"

    # Loose sanity check against the pure-f32 PyTorch-semantics reference
    # (difference is only bf16 operand rounding).
    ref_f32 = ff_network_reference_f32(x, w1, b1, w2, b2)
    assert jnp.allclose(out, ref_f32, atol=1e-1, rtol=5e-2), "mismatch vs f32 reference"

    print("KERNEL_OK")
</pallas_src>

<mosaic_0001>
module attributes {stable_mosaic.version = 11 : i64} {
  func.func @ffn_kernel(%arg0: i32, %arg1: i32, %arg2: memref<16x128xbf16, #tpu.memory_space<vmem>>, %arg3: memref<128x128xbf16, #tpu.memory_space<vmem>>, %arg4: memref<1x128xf32, #tpu.memory_space<vmem>>, %arg5: memref<128x128xbf16, #tpu.memory_space<vmem>>, %arg6: memref<1x128xf32, #tpu.memory_space<vmem>>, %arg7: memref<16x128xf32, #tpu.memory_space<vmem>>) attributes {dimension_semantics = [#tpu.dimension_semantics<parallel>, #tpu.dimension_semantics<arbitrary>], iteration_bounds = array<i64: 1, 1>, scalar_prefetch = 0 : i64, scratch_operands = 0 : i64, tpu.core_type = #tpu.core_type<tc>, window_params = [{transform_indices = @transform_0, window_bounds = array<i64: 16, 128>}, {transform_indices = @transform_1, window_bounds = array<i64: 128, 128>}, {transform_indices = @transform_2, window_bounds = array<i64: 1, 128>}, {transform_indices = @transform_3, window_bounds = array<i64: 128, 128>}, {pipeline_mode = #tpu.pipeline_mode<synchronous>, transform_indices = @transform_4, window_bounds = array<i64: 1, 128>}, {transform_indices = @transform_5, window_bounds = array<i64: 16, 128>}]} {
    %c0 = arith.constant 0 : index
    %c0_0 = arith.constant 0 : index
    %0 = vector.load %arg2[%c0, %c0_0] : memref<16x128xbf16, #tpu.memory_space<vmem>>, vector<16x128xbf16>
    %c0_1 = arith.constant 0 : index
    %c0_2 = arith.constant 0 : index
    %1 = vector.load %arg3[%c0_1, %c0_2] : memref<128x128xbf16, #tpu.memory_space<vmem>>, vector<128x128xbf16>
    %cst = arith.constant dense<0.000000e+00> : vector<16x128xf32>
    %2 = tpu.matmul %0, %1, %cst {dimension_numbers = #tpu.dot_dimension_numbers<[1], [0], [0], [1], [0, 0, 1, 1], [], []>} : vector<16x128xbf16>, vector<128x128xbf16>, vector<16x128xf32> -> vector<16x128xf32>
    %c0_3 = arith.constant 0 : index
    %c0_4 = arith.constant 0 : index
    %3 = vector.load %arg4[%c0_3, %c0_4] : memref<1x128xf32, #tpu.memory_space<vmem>>, vector<1x128xf32>
    %4 = vector.broadcast %3 : vector<1x128xf32> to vector<16x128xf32>
    %5 = arith.addf %2, %4 : vector<16x128xf32>
    %cst_5 = arith.constant 0.000000e+00 : f32
    %6 = vector.broadcast %cst_5 : f32 to vector<16x128xf32>
    %7 = arith.maximumf %5, %6 : vector<16x128xf32>
    %8 = arith.truncf %7 : vector<16x128xf32> to vector<16x128xbf16>
    %c0_6 = arith.constant 0 : index
    %c0_7 = arith.constant 0 : index
    %9 = vector.load %arg5[%c0_6, %c0_7] : memref<128x128xbf16, #tpu.memory_space<vmem>>, vector<128x128xbf16>
    %cst_8 = arith.constant dense<0.000000e+00> : vector<16x128xf32>
    %10 = tpu.matmul %8, %9, %cst_8 {dimension_numbers = #tpu.dot_dimension_numbers<[1], [0], [0], [1], [0, 0, 1, 1], [], []>} : vector<16x128xbf16>, vector<128x128xbf16>, vector<16x128xf32> -> vector<16x128xf32>
    %c0_9 = arith.constant 0 : index
    %c0_10 = arith.constant 0 : index
    %11 = vector.load %arg6[%c0_9, %c0_10] : memref<1x128xf32, #tpu.memory_space<vmem>>, vector<1x128xf32>
    %12 = vector.broadcast %11 : vector<1x128xf32> to vector<16x128xf32>
    %13 = arith.addf %10, %12 : vector<16x128xf32>
    %c0_11 = arith.constant 0 : index
    %c0_12 = arith.constant 0 : index
    %14 = vector.load %arg7[%c0_11, %c0_12] : memref<16x128xf32, #tpu.memory_space<vmem>>, vector<16x128xf32>
    tpu.vector_store %arg7[%c0_11, %c0_12], %13 {strides = array<i32>} : memref<16x128xf32, #tpu.memory_space<vmem>>, vector<16x128xf32>,
    return
  }
  func.func @transform_0(%arg0: i32, %arg1: i32) -> (i32, i32) {
    %c0_i32 = arith.constant 0 : i32
    %c0_i32_0 = arith.constant 0 : i32
    return %arg0, %c0_i32 : i32, i32
  }
  func.func @transform_1(%arg0: i32, %arg1: i32) -> (i32, i32) {
    %c0_i32 = arith.constant 0 : i32
    %c0_i32_0 = arith.constant 0 : i32
    return %c0_i32, %arg1 : i32, i32
  }
  func.func @transform_2(%arg0: i32, %arg1: i32) -> (i32, i32) {
    %c0_i32 = arith.constant 0 : i32
    %c0_i32_0 = arith.constant 0 : i32
    return %c0_i32, %arg1 : i32, i32
  }
  func.func @transform_3(%arg0: i32, %arg1: i32) -> (i32, i32) {
    %c0_i32 = arith.constant 0 : i32
    %c0_i32_0 = arith.constant 0 : i32
    return %arg1, %c0_i32 : i32, i32
  }
  func.func @transform_4(%arg0: i32, %arg1: i32) -> (i32, i32) {
    %c0_i32 = arith.constant 0 : i32
    %c0_i32_0 = arith.constant 0 : i32
    %c0_i32_1 = arith.constant 0 : i32
    return %c0_i32, %c0_i32_0 : i32, i32
  }
  func.func @transform_5(%arg0: i32, %arg1: i32) -> (i32, i32) {
    %c0_i32 = arith.constant 0 : i32
    %c0_i32_0 = arith.constant 0 : i32
    return %arg0, %c0_i32 : i32, i32
  }
}

</mosaic_0001>

<llo_original>
// kernel: _ffn_forward_impl.1
$region0: #{_ffn_forward_impl.1}
  #allocation0 [shape = 'u32[]', space=smem, size = 0x4, offset = 0x4, fixed_abs, tag = 'smem constant byte address 0x4 - core index']
  #allocation1 [shape = 'u32[144,128]{1,0:T(1,128)}', space=vmem, size = 0x12000, scoped, tag = 'internal scratch']
  %s0 = inlined_call_operand.vmem [shape: bf16[16,128], index: 0, kind: input, shape index: {}]
  %s1 = inlined_call_operand.hbm [shape: bf16[128,128], index: 1, kind: input, shape index: {}]
  %s2 = inlined_call_operand.vmem [shape: f32[1,128], index: 2, kind: input, shape index: {}]
  %s3 = inlined_call_operand.hbm [shape: bf16[128,128], index: 3, kind: input, shape index: {}]
  %s4 = inlined_call_operand.vmem [shape: f32[1,128], index: 4, kind: input, shape index: {}]
  %s5 = inlined_call_operand.vmem [shape: f32[16,128], index: 5, kind: output, shape index: {}]
  %s6 = sld [smem:[#allocation0]]
  $region38: #{_ffn_forward_impl.1} parent=0
    _
  %s8 = ssub.s32 1, %s6
  %s9 = scalar_select 0, %s8, %s6
  $region1: #{_ffn_forward_impl.1} parent=0
    #allocation2 [shape = 'u8[32768]{0}', space=vmem, size = 0x8000, scoped, tag = 'input window, operand 1, single buffered']
    #allocation3 [shape = 's32[1]{0}', space=sflag, size = 0x4, scoped, tag = 'scoped memory for _ffn_forward_impl.1']
    #allocation4 [shape = 'u8[32768]{0}', space=vmem, size = 0x8000, scoped, tag = 'input window, operand 3, single buffered']
    #allocation5 [shape = 's32[1]{0}', space=sflag, size = 0x4, scoped, tag = 'scoped memory for _ffn_forward_impl.1']
    %10 = vsyncpa [#allocation3], 0
    %11 = vsyncpa [#allocation5], 0
    // Predicated region
    $region2: #{_ffn_forward_impl.1} parent=1 // pred_check
      _
    $region3: #{_ffn_forward_impl.1} parent=1 // pred_check_branch
      %13 = sbr.rel (0) target = $region5
    $region4: #{_ffn_forward_impl.1} parent=1 // pred_region
      _
    $region5: #{_ffn_forward_impl.1} parent=1 // pred_fallthru
      _
    // Predicated region
    $region6: #{_ffn_forward_impl.1} parent=1 // pred_check
      _
    $region7: #{_ffn_forward_impl.1} parent=1 // pred_check_branch
      %15 = sbr.rel (0) target = $region9
    $region8: #{_ffn_forward_impl.1} parent=1 // pred_region
      %s17 = ssub.s32 1024, 1024
      %18 = vsyncadd [#allocation3], %s17
      %s19 = sshll.u32 [#allocation2], 4
      %s20 = int_to_ptr.vmem [resolvable:$true] %s19
      %25 = dma.hbm_to_vmem [thread:$0]  %s1, 1024, %s20, [#allocation3], 64, 64, 4
    $region9: #{_ffn_forward_impl.1} parent=1 // pred_fallthru
      _
    // Predicated region
    $region10: #{_ffn_forward_impl.1} parent=1 // pred_check
      _
    $region11: #{_ffn_forward_impl.1} parent=1 // pred_check_branch
      %27 = sbr.rel (0) target = $region13
    $region12: #{_ffn_forward_impl.1} parent=1 // pred_region
      _
    $region13: #{_ffn_forward_impl.1} parent=1 // pred_fallthru
      _
    // Predicated region
    $region14: #{_ffn_forward_impl.1} parent=1 // pred_check
      _
    $region15: #{_ffn_forward_impl.1} parent=1 // pred_check_branch
      %29 = sbr.rel (0) target = $region17
    $region16: #{_ffn_forward_impl.1} parent=1 // pred_region
      %s31 = ssub.s32 1024, 1024
      %32 = vsyncadd [#allocation5], %s31
      %s33 = sshll.u32 [#allocation4], 4
      %s34 = int_to_ptr.vmem [resolvable:$true] %s33
      %39 = dma.hbm_to_vmem [thread:$0]  %s3, 1024, %s34, [#allocation5], 64, 64, 4
    $region17: #{_ffn_forward_impl.1} parent=1 // pred_fallthru
      _
    // Predicated region
    $region18: #{_ffn_forward_impl.1} parent=1 // pred_check
      _
    $region19: #{_ffn_forward_impl.1} parent=1 // pred_check_branch
      %41 = sbr.rel (0) target = $region21
    $region20: #{_ffn_forward_impl.1} parent=1 // pred_region
      _
    $region21: #{_ffn_forward_impl.1} parent=1 // pred_fallthru
      _
    // Predicated region
    $region22: #{_ffn_forward_impl.1} parent=1 // pred_check
      _
    $region23: #{_ffn_forward_impl.1} parent=1 // pred_check_branch
      %43 = sbr.rel (0) target = $region25
    $region24: #{_ffn_forward_impl.1} parent=1 // pred_region
      %44 = dma.done [#allocation3], 1024
    $region25: #{_ffn_forward_impl.1} parent=1 // pred_fallthru
      _
    // Predicated region
    $region26: #{_ffn_forward_impl.1} parent=1 // pred_check
      _
    $region27: #{_ffn_forward_impl.1} parent=1 // pred_check_branch
      %46 = sbr.rel (0) target = $region29
    $region28: #{_ffn_forward_impl.1} parent=1 // pred_region
      %47 = dma.done [#allocation5], 1024
    $region29: #{_ffn_forward_impl.1} parent=1 // pred_fallthru
      _
    %v49 = vld [vmem:[%s0] sm:$0xf]
    %v50 = vld [vmem:[%s0 + $0x4] sm:$0xf]
    %v51 = vld [vmem:[#allocation2] sm:$0xf]
    %v52 = vld [vmem:[#allocation2 + $0x4] sm:$0xf]
    %v53 = vld [vmem:[#allocation2 + $0x8] sm:$0xf]
    %v54 = vld [vmem:[#allocation2 + $0xc] sm:$0xf]
    %v55 = vld [vmem:[#allocation2 + $0x10] sm:$0xf]
    %v56 = vld [vmem:[#allocation2 + $0x14] sm:$0xf]
    %v57 = vld [vmem:[#allocation2 + $0x18] sm:$0xf]
    %v58 = vld [vmem:[#allocation2 + $0x1c] sm:$0xf]
    %v59 = vld [vmem:[#allocation2 + $0x20] sm:$0xf]
    %v60 = vld [vmem:[#allocation2 + $0x24] sm:$0xf]
    %v61 = vld [vmem:[#allocation2 + $0x28] sm:$0xf]
    %v62 = vld [vmem:[#allocation2 + $0x2c] sm:$0xf]
    %v63 = vld [vmem:[#allocation2 + $0x30] sm:$0xf]
    %v64 = vld [vmem:[#allocation2 + $0x34] sm:$0xf]
    %v65 = vld [vmem:[#allocation2 + $0x38] sm:$0xf]
    %v66 = vld [vmem:[#allocation2 + $0x3c] sm:$0xf]
    %v67 = vld [vmem:[%s2] sm:$0x1]
    %v69 = vlaneseq
    %v70 = vshrl.u32 %v69, 7
    %v71 = vsub.s32 0, %v70
    %v72 = vrot.slane %v67, %v71
    %v76 = vunpack.c.l.b16 %v49
    %v77 = vunpack.c.l.b16 %v50
    %v78 = vpack.c.b16 %v77, %v76
    %v96 = vunpack.c.l.b16 %v51
    %v97 = vunpack.c.l.b16 %v52
    %v98 = vunpack.c.l.b16 %v53
    %v99 = vunpack.c.l.b16 %v54
    %v100 = vunpack.c.l.b16 %v55
    %v101 = vunpack.c.l.b16 %v56
    %v102 = vunpack.c.l.b16 %v57
    %v103 = vunpack.c.l.b16 %v58
    %v104 = vunpack.c.l.b16 %v59
    %v105 = vunpack.c.l.b16 %v60
    %v106 = vunpack.c.l.b16 %v61
    %v107 = vunpack.c.l.b16 %v62
    %v108 = vunpack.c.l.b16 %v63
    %v109 = vunpack.c.l.b16 %v64
    %v110 = vunpack.c.l.b16 %v65
    %v111 = vunpack.c.l.b16 %v66
    %v112 = vpack.c.b16 %v97, %v96
    %v113 = vpack.c.b16 %v99, %v98
    %v114 = vpack.c.b16 %v101, %v100
    %v115 = vpack.c.b16 %v103, %v102
    %v116 = vpack.c.b16 %v105, %v104
    %v117 = vpack.c.b16 %v107, %v106
    %v118 = vpack.c.b16 %v109, %v108
    %v119 = vpack.c.b16 %v111, %v110
    %128 = vmatprep.subr.bf16.mxu0 0
    %129 = vmatpush1.bf16.msra.mxu0 %v119
    %130 = vmatprep.subr.bf16.mxu0 0
    %131 = vmatpush1.bf16.msra.mxu0 %v118
    %132 = vmatprep.subr.bf16.mxu0 0
    %133 = vmatpush1.bf16.msra.mxu0 %v117
    %134 = vmatprep.subr.bf16.mxu0 0
    %135 = vmatpush1.bf16.msra.mxu0 %v116
    %136 = vmatprep.subr.bf16.mxu0 0
    %137 = vmatpush1.bf16.msra.mxu0 %v115
    %138 = vmatprep.subr.bf16.mxu0 0
    %139 = vmatpush1.bf16.msra.mxu0 %v114
    %140 = vmatprep.subr.bf16.mxu0 0
    %141 = vmatpush1.bf16.msra.mxu0 %v113
    %142 = vmatprep.subr.bf16.mxu0 0
    %143 = vmatpush1.bf16.msra.mxu0 %v112
    %144 = vmatprep.subr.bf16.mxu0 0
    %145 = vmatpush2.bf16.msra.mxu0 0
    %146 = vmatprep.subr.bf16.mxu0 0
    %147 = vmatpush2.bf16.msra.mxu0 0
    %148 = vmatprep.subr.bf16.mxu0 0
    %149 = vmatpush2.bf16.msra.mxu0 0
    %150 = vmatprep.subr.bf16.mxu0 0
    %151 = vmatpush2.bf16.msra.mxu0 0
    %152 = vmatprep.subr.bf16.mxu0 0
    %153 = vmatpush2.bf16.msra.mxu0 0
    %154 = vmatprep.subr.bf16.mxu0 0
    %155 = vmatpush2.bf16.msra.mxu0 0
    %156 = vmatprep.subr.bf16.mxu0 0
    %157 = vmatpush2.bf16.msra.mxu0 0
    %158 = vmatprep.subr.bf16.mxu0 0
    %159 = vmatpush2.bf16.msra.mxu0 0
    %160 = vmatprep.mubr.bf16.mxu0 0
    %161 = vmatmul.mubr.bf16.gmra.mxu0 %v78
    %v162 = vpop.f32.mrf.mxu0
    %v163 = vadd.f32 %v72, %v162
    %v164 = vpop.f32.mrf.mxu0
    %v165 = vpop.f32.mrf.mxu0
    %v166 = vadd.f32 %v72, %v165
    %v167 = vpop.f32.mrf.mxu0
    %168 = vdwg.mxu0
    %v169 = vmax.f32 %v163, 0.0
    %v170 = vmax.f32 %v166, 0.0
    %v171 = vpack.c.bf16 %v170, %v169
    %v172 = vld [vmem:[#allocation4] sm:$0xf]
    %v173 = vld [vmem:[#allocation4 + $0x4] sm:$0xf]
    %v174 = vld [vmem:[#allocation4 + $0x8] sm:$0xf]
    %v175 = vld [vmem:[#allocation4 + $0xc] sm:$0xf]
    %v176 = vld [vmem:[#allocation4 + $0x10] sm:$0xf]
    %v177 = vld [vmem:[#allocation4 + $0x14] sm:$0xf]
    %v178 = vld [vmem:[#allocation4 + $0x18] sm:$0xf]
    %v179 = vld [vmem:[#allocation4 + $0x1c] sm:$0xf]
    %v180 = vld [vmem:[#allocation4 + $0x20] sm:$0xf]
    %v181 = vld [vmem:[#allocation4 + $0x24] sm:$0xf]
    %v182 = vld [vmem:[#allocation4 + $0x28] sm:$0xf]
    %v183 = vld [vmem:[#allocation4 + $0x2c] sm:$0xf]
    %v184 = vld [vmem:[#allocation4 + $0x30] sm:$0xf]
    %v185 = vld [vmem:[#allocation4 + $0x34] sm:$0xf]
    %v186 = vld [vmem:[#allocation4 + $0x38] sm:$0xf]
    %v187 = vld [vmem:[#allocation4 + $0x3c] sm:$0xf]
    %v188 = vld [vmem:[%s4] sm:$0x1]
    %v190 = vlaneseq
    %v191 = vshrl.u32 %v190, 7
    %v192 = vsub.s32 0, %v191
    %v193 = vrot.slane %v188, %v192
    %v211 = vunpack.c.l.b16 %v172
    %v212 = vunpack.c.l.b16 %v173
    %v213 = vunpack.c.l.b16 %v174
    %v214 = vunpack.c.l.b16 %v175
    %v215 = vunpack.c.l.b16 %v176
    %v216 = vunpack.c.l.b16 %v177
    %v217 = vunpack.c.l.b16 %v178
    %v218 = vunpack.c.l.b16 %v179
    %v219 = vunpack.c.l.b16 %v180
    %v220 = vunpack.c.l.b16 %v181
    %v221 = vunpack.c.l.b16 %v182
    %v222 = vunpack.c.l.b16 %v183
    %v223 = vunpack.c.l.b16 %v184
    %v224 = vunpack.c.l.b16 %v185
    %v225 = vunpack.c.l.b16 %v186
    %v226 = vunpack.c.l.b16 %v187
    %v227 = vpack.c.b16 %v212, %v211
    %v228 = vpack.c.b16 %v214, %v213
    %v229 = vpack.c.b16 %v216, %v215
    %v230 = vpack.c.b16 %v218, %v217
    %v231 = vpack.c.b16 %v220, %v219
    %v232 = vpack.c.b16 %v222, %v221
    %v233 = vpack.c.b16 %v224, %v223
    %v234 = vpack.c.b16 %v226, %v225
    %243 = vmatprep.subr.bf16.mxu0 0
    %244 = vmatpush1.bf16.msra.mxu0 %v234
    %245 = vmatprep.subr.bf16.mxu0 0
    %246 = vmatpush1.bf16.msra.mxu0 %v233
    %247 = vmatprep.subr.bf16.mxu0 0
    %248 = vmatpush1.bf16.msra.mxu0 %v232
    %249 = vmatprep.subr.bf16.mxu0 0
    %250 = vmatpush1.bf16.msra.mxu0 %v231
    %251 = vmatprep.subr.bf16.mxu0 0
    %252 = vmatpush1.bf16.msra.mxu0 %v230
    %253 = vmatprep.subr.bf16.mxu0 0
    %254 = vmatpush1.bf16.msra.mxu0 %v229
    %255 = vmatprep.subr.bf16.mxu0 0
    %256 = vmatpush1.bf16.msra.mxu0 %v228
    %257 = vmatprep.subr.bf16.mxu0 0
    %258 = vmatpush1.bf16.msra.mxu0 %v227
    %259 = vmatprep.subr.bf16.mxu0 0
    %260 = vmatpush2.bf16.msra.mxu0 0
    %261 = vmatprep.subr.bf16.mxu0 0
    %262 = vmatpush2.bf16.msra.mxu0 0
    %263 = vmatprep.subr.bf16.mxu0 0
    %264 = vmatpush2.bf16.msra.mxu0 0
    %265 = vmatprep.subr.bf16.mxu0 0
    %266 = vmatpush2.bf16.msra.mxu0 0
    %267 = vmatprep.subr.bf16.mxu0 0
    %268 = vmatpush2.bf16.msra.mxu0 0
    %269 = vmatprep.subr.bf16.mxu0 0
    %270 = vmatpush2.bf16.msra.mxu0 0
    %271 = vmatprep.subr.bf16.mxu0 0
    %272 = vmatpush2.bf16.msra.mxu0 0
    %273 = vmatprep.subr.bf16.mxu0 0
    %274 = vmatpush2.bf16.msra.mxu0 0
    %275 = vmatprep.mubr.bf16.mxu0 0
    %276 = vmatmul.mubr.bf16.gmra.mxu0 %v171
    %v277 = vpop.f32.mrf.mxu0
    %v278 = vadd.f32 %v193, %v277
    %v279 = vpop.f32.mrf.mxu0
    %v280 = vpop.f32.mrf.mxu0
    %v281 = vadd.f32 %v193, %v280
    %v282 = vpop.f32.mrf.mxu0
    %283 = vdwg.mxu0
    %284 = vst [vmem:[%s5] sm:$0xff] %v278
    %285 = vst [vmem:[%s5 + $0x8] sm:$0xff] %v281
    // Predicated region
    $region30: #{_ffn_forward_impl.1} parent=1 // pred_check
      _
    $region31: #{_ffn_forward_impl.1} parent=1 // pred_check_branch
      %287 = sbr.rel (0) target = $region33
    $region32: #{_ffn_forward_impl.1} parent=1 // pred_region
      _
    $region33: #{_ffn_forward_impl.1} parent=1 // pred_fallthru
      _
    // Predicated region
    $region34: #{_ffn_forward_impl.1} parent=1 // pred_check
      _
    $region35: #{_ffn_forward_impl.1} parent=1 // pred_check_branch
      %289 = sbr.rel (0) target = $region37
    $region36: #{_ffn_forward_impl.1} parent=1 // pred_region
      _
    $region37: #{_ffn_forward_impl.1} parent=1 // pred_fallthru
      _
    %290 = vsyncpa [#allocation3], 1
    %291 = vsyncpa [#allocation5], 1

</llo_original>
